<compile_context>
chip_gen: v7x
topology: tpu7x:2x2x1
jax: 0.10.0
libtpu: 0.0.40
codegen_flags: <defaults>
</compile_context>

<pallas_src>
import functools

import jax
import jax.numpy as jnp
from jax import lax
from jax.experimental import pallas as pl
from jax.experimental.pallas import tpu as pltpu

EPS = 1e-5
_EXT_PAD = 128   # lane extension on each side of the flattened (H*W) image (>= W+1)


def hexblock_kernel(x_ref, w_ref, p_ref, o_ref, ext_ref, *, n_batch, height, width):
    # x_ref  : (N*Cin, H*W)          NCHW input, one (n, c) image per sublane row
    # w_ref  : (N*Cout, 7*N*Cin)     block-diagonal packed hex-conv weights
    # p_ref  : (N*Cout, 3)           [:,0]=conv bias, [:,1]=BN gamma, [:,2]=BN beta
    # o_ref  : (N*Cout, H*W)         output; reshapes to NCHW for free in the wrapper
    # ext_ref: (N*Cin, H*W + 2*PAD)  VMEM scratch: lane-extended (zero halo) copy of x
    H, W = height, width
    HW = H * W
    cout = o_ref.shape[0] // n_batch
    pad = (ext_ref.shape[1] - HW) // 2
    m = n_batch * HW                       # elements per channel for batch statistics

    # ---- stage the input into the lane-extended scratch (halo/pad done in-kernel) ----
    x_val = x_ref[...]
    ext_ref[...] = jnp.zeros_like(ext_ref)
    ext_ref[:, pad:pad + HW] = x_val       # 128-aligned dense store

    def win(dh, dw):
        # tap[(n,c), h*W+w] = x[n, c, h+dh, w+dw]; vertical overflow falls into the
        # zero extension, horizontal wrap across rows is masked below.
        off = dh * W + dw
        return ext_ref[:, pad + off:pad + off + HW]

    # ---- per-lane masks, built once from a single iota --------------------------------
    lane = lax.broadcasted_iota(jnp.int32, (1, HW), 1)
    w_idx = lane % W
    even = (w_idx & 1) == 0                                 # parity of the output column
    f_left = (w_idx >= 1).astype(jnp.float32)               # dw=-1 taps invalid at w==0
    f_right = (w_idx <= W - 2).astype(jnp.float32)          # dw=+1 taps invalid at w==W-1

    # ---- 7 hexagonal taps (centre tap == residual input) ------------------------------
    t_cu = win(-1, 0)
    t_cd = win(1, 0)
    lu, lm, ld = win(-1, -1), win(0, -1), win(1, -1)
    ru, rm, rd = win(-1, 1), win(0, 1), win(1, 1)
    t_l0 = jnp.where(even, lu, lm) * f_left                 # upper left neighbour
    t_l1 = jnp.where(even, lm, ld) * f_left                 # lower left neighbour
    t_r0 = jnp.where(even, ru, rm) * f_right                # upper right neighbour
    t_r1 = jnp.where(even, rm, rd) * f_right                # lower right neighbour

    # ---- one MXU dot over the concatenated taps (K = 7*N*Cin) -------------------------
    taps = jnp.concatenate([t_cu, x_val, t_cd, t_l0, t_l1, t_r0, t_r1], axis=0)
    acc = jnp.dot(w_ref[...], taps, preferred_element_type=jnp.float32)  # (N*Cout, HW)
    acc = acc + p_ref[:, 0:1]                                            # conv bias

    # ---- BatchNorm2d, training mode: biased per-channel stats over (N, H, W) ----------
    def per_channel(v):        # (N*Cout, 1) lane-sums -> summed over batch, re-tiled
        tot = v[0:cout, :]
        for n in range(1, n_batch):
            tot = tot + v[n * cout:(n + 1) * cout, :]
        return jnp.concatenate([tot] * n_batch, axis=0)

    inv_m = jnp.float32(1.0 / m)
    mean = per_channel(jnp.sum(acc, axis=1, keepdims=True)) * inv_m
    cen = acc - mean
    var = per_channel(jnp.sum(cen * cen, axis=1, keepdims=True)) * inv_m
    scale = p_ref[:, 1:2] * lax.rsqrt(var + EPS)            # gamma folded into scale
    shift = p_ref[:, 2:3] - mean * scale                    # beta folded into shift
    y = acc * scale + shift                                 # single FMA-style BN apply

    # ---- residual (requires Cin == Cout) + ReLU; one dense lane-aligned store ----------
    o_ref[...] = jnp.maximum(y + x_val, 0.0)


def hex_tap_weights(kernel0, kernel1):
    # Per-tap (Cout, Cin) weight slices in kernel tap order.
    # kernel0: (Cout, Cin, 3, 1) centre column; kernel1: (Cout, Cin, 2, 2) side columns.
    w0 = kernel0[..., 0]                                    # (Cout, Cin, 3)
    return [w0[..., 0], w0[..., 1], w0[..., 2],
            kernel1[..., 0, 0], kernel1[..., 1, 0],
            kernel1[..., 0, 1], kernel1[..., 1, 1]]


def pack_block_weights(kernel0, kernel1, n_batch):
    # w_big[n*Cout + o, k*N*Cin + n'*Cin + c] = w_k[o, c] if n == n' else 0
    taps = hex_tap_weights(kernel0, kernel1)
    eye = jnp.eye(n_batch, dtype=kernel0.dtype)
    return jnp.concatenate([jnp.kron(eye, t) for t in taps], axis=1)   # (N*Cout, 7*N*Cin)


def make_params(cin, cout, key):
    # hexagdly-style init: uniform(-s, s) with s = 1/sqrt(cin * 7 hex cells);
    # BatchNorm2d init: weight=1, bias=0.  Deterministic (fixed key).
    k0, k1, k2 = jax.random.split(key, 3)
    stdv = (1.0 / (cin * 7)) ** 0.5
    return dict(
        kernel0=jax.random.uniform(k0, (cout, cin, 3, 1), jnp.float32, -stdv, stdv),
        kernel1=jax.random.uniform(k1, (cout, cin, 2, 2), jnp.float32, -stdv, stdv),
        bias=jax.random.uniform(k2, (cout,), jnp.float32, -stdv, stdv),
        gamma=jnp.ones((cout,), jnp.float32),
        beta=jnp.zeros((cout,), jnp.float32),
    )


@jax.jit
def hexblock_forward(x_nchw, params):
    # x_nchw: (N, C, H, W) float32 (PyTorch layout); returns (N, C, H, W).
    N, C, H, W = x_nchw.shape
    cout, cin = params["kernel0"].shape[:2]
    assert cin == C and cout == C, "residual add requires in_channels == out_channels"
    assert W + 1 <= _EXT_PAD
    HW = H * W

    x2d = x_nchw.reshape(N * C, HW)                         # zero-copy NCHW view
    w_big = pack_block_weights(params["kernel0"], params["kernel1"], N)
    pvec = jnp.tile(jnp.stack([params["bias"], params["gamma"], params["beta"]],
                              axis=1), (N, 1))              # (N*Cout, 3)

    vmem = pl.BlockSpec(memory_space=pltpu.MemorySpace.VMEM)
    kernel = functools.partial(hexblock_kernel, n_batch=N, height=H, width=W)
    y2d = pl.pallas_call(
        kernel,
        out_shape=jax.ShapeDtypeStruct((N * cout, HW), jnp.float32),
        in_specs=[vmem, vmem, vmem],
        out_specs=vmem,
        scratch_shapes=[pltpu.VMEM((N * C, HW + 2 * _EXT_PAD), jnp.float32)],
        compiler_params=pltpu.CompilerParams(vmem_limit_bytes=32 * 1024 * 1024),
    )(x2d, w_big, pvec)
    return y2d.reshape(N, cout, H, W)                       # zero-copy back to NCHW


def hexblock_reference(x_nchw, params):
    # Pure-JAX reference with identical semantics (validation only).
    x = jnp.transpose(x_nchw, (0, 2, 3, 1))                 # NHWC
    N, H, W, C = x.shape
    xp = jnp.pad(x, ((0, 0), (1, 1), (1, 1), (0, 0)))

    def win(dh, dw):
        return xp[:, 1 + dh:1 + dh + H, 1 + dw:1 + dw + W, :]

    is_even = (jnp.arange(W).reshape(1, 1, W, 1) % 2) == 0
    taps = [win(-1, 0), win(0, 0), win(1, 0)]
    for dw in (-1, 1):
        taps.append(jnp.where(is_even, win(-1, dw), win(0, dw)))
        taps.append(jnp.where(is_even, win(0, dw), win(1, dw)))
    wts = hex_tap_weights(params["kernel0"], params["kernel1"])   # 7 x (Cout, Cin)
    acc = sum(jnp.einsum("nhwc,oc->nhwo", t, wts[k],
                         precision=lax.Precision.HIGHEST)
              for k, t in enumerate(taps))
    acc = acc + params["bias"].reshape(1, 1, 1, -1)
    mean = acc.mean(axis=(0, 1, 2), keepdims=True)
    var = ((acc - mean) ** 2).mean(axis=(0, 1, 2), keepdims=True)
    y = (acc - mean) * lax.rsqrt(var + EPS)
    y = y * params["gamma"].reshape(1, 1, 1, -1) + params["beta"].reshape(1, 1, 1, -1)
    y = jnp.maximum(y + x, 0.0)
    return jnp.transpose(y, (0, 3, 1, 2))


if __name__ == "__main__":
    key = jax.random.PRNGKey(0)
    kx, kp = jax.random.split(key)
    N, C, H, W = 2, 4, 16, 16                  # residual add requires in_ch == out_ch
    x = jax.random.normal(kx, (N, C, H, W), jnp.float32)
    params = make_params(C, C, kp)

    out = jax.block_until_ready(hexblock_forward(x, params))
    ref = hexblock_reference(x, params)

    assert out.shape == (N, C, H, W) and out.dtype == jnp.float32
    assert bool(jnp.all(jnp.isfinite(out)))
    assert bool(jnp.allclose(out, ref, atol=1e-4, rtol=1e-4)), \
        float(jnp.max(jnp.abs(out - ref)))
    print("KERNEL_OK")
</pallas_src>

<mosaic_0001>
module attributes {stable_mosaic.version = 11 : i64} {
  func.func @hexblock_kernel(%arg0: memref<8x256xf32, #tpu.memory_space<vmem>>, %arg1: memref<8x56xf32, #tpu.memory_space<vmem>>, %arg2: memref<8x3xf32, #tpu.memory_space<vmem>>, %arg3: memref<8x256xf32, #tpu.memory_space<vmem>>, %arg4: memref<8x512xf32, #tpu.memory_space<vmem>>) attributes {dimension_semantics = [], scalar_prefetch = 0 : i64, scratch_operands = 1 : i64, tpu.core_type = #tpu.core_type<tc>} {
    %c0 = arith.constant 0 : index
    %c0_0 = arith.constant 0 : index
    %0 = vector.load %arg0[%c0, %c0_0] : memref<8x256xf32, #tpu.memory_space<vmem>>, vector<8x256xf32>
    %cst = arith.constant 0.000000e+00 : f32
    %1 = vector.broadcast %cst : f32 to vector<8x512xf32>
    %c0_1 = arith.constant 0 : index
    %c0_2 = arith.constant 0 : index
    %2 = vector.load %arg4[%c0_1, %c0_2] : memref<8x512xf32, #tpu.memory_space<vmem>>, vector<8x512xf32>
    tpu.vector_store %arg4[%c0_1, %c0_2], %1 {strides = array<i32>} : memref<8x512xf32, #tpu.memory_space<vmem>>, vector<8x512xf32>,
    %c0_3 = arith.constant 0 : index
    %c128 = arith.constant 128 : index
    %3 = vector.load %arg4[%c0_3, %c128] : memref<8x512xf32, #tpu.memory_space<vmem>>, vector<8x256xf32>
    tpu.vector_store %arg4[%c0_3, %c128], %0 {strides = array<i32>} : memref<8x512xf32, #tpu.memory_space<vmem>>, vector<8x256xf32>,
    %4 = tpu.iota {dimensions = array<i32: 1>} : vector<1x256xi32>
    %c16_i32 = arith.constant 16 : i32
    %c0_i32 = arith.constant 0 : i32
    %5 = arith.cmpi eq, %c16_i32, %c0_i32 : i32
    %c1_i32 = arith.constant 1 : i32
    %6 = arith.select %5, %c1_i32, %c16_i32 : i32
    %7 = vector.broadcast %6 : i32 to vector<1x256xi32>
    %8 = arith.remsi %4, %7 : vector<1x256xi32>
    %c0_i32_4 = arith.constant 0 : i32
    %9 = vector.broadcast %c0_i32_4 : i32 to vector<1x256xi32>
    %10 = arith.cmpi ne, %8, %9 : vector<1x256xi32>
    %c0_i32_5 = arith.constant 0 : i32
    %11 = vector.broadcast %c0_i32_5 : i32 to vector<1x256xi32>
    %12 = arith.cmpi slt, %8, %11 : vector<1x256xi32>
    %c0_i32_6 = arith.constant 0 : i32
    %13 = arith.cmpi slt, %6, %c0_i32_6 : i32
    %14 = vector.broadcast %13 : i1 to vector<1x256xi1>
    %15 = vector.broadcast %14 : vector<1x256xi1> to vector<1x256xi1>
    %16 = arith.xori %12, %15 : vector<1x256xi1>
    %17 = arith.andi %16, %10 : vector<1x256xi1>
    %18 = vector.broadcast %6 : i32 to vector<1x256xi32>
    %19 = arith.addi %8, %18 : vector<1x256xi32>
    %20 = arith.select %17, %19, %8 : vector<1x256xi1>, vector<1x256xi32>
    %c1_i32_7 = arith.constant 1 : i32
    %21 = vector.broadcast %c1_i32_7 : i32 to vector<1x256xi32>
    %22 = arith.andi %20, %21 : vector<1x256xi32>
    %c0_i32_8 = arith.constant 0 : i32
    %23 = vector.broadcast %c0_i32_8 : i32 to vector<1x256xi32>
    %24 = arith.cmpi eq, %22, %23 : vector<1x256xi32>
    %c1_i32_9 = arith.constant 1 : i32
    %25 = vector.broadcast %c1_i32_9 : i32 to vector<1x256xi32>
    %26 = arith.cmpi sge, %20, %25 : vector<1x256xi32>
    %27 = arith.extui %26 : vector<1x256xi1> to vector<1x256xi32>
    %28 = arith.sitofp %27 : vector<1x256xi32> to vector<1x256xf32>
    %c14_i32 = arith.constant 14 : i32
    %29 = vector.broadcast %c14_i32 : i32 to vector<1x256xi32>
    %30 = arith.cmpi sle, %20, %29 : vector<1x256xi32>
    %31 = arith.extui %30 : vector<1x256xi1> to vector<1x256xi32>
    %32 = arith.sitofp %31 : vector<1x256xi32> to vector<1x256xf32>
    %c0_10 = arith.constant 0 : index
    %c112 = arith.constant 112 : index
    %33 = vector.load %arg4[%c0_10, %c112] : memref<8x512xf32, #tpu.memory_space<vmem>>, vector<8x256xf32>
    %c0_11 = arith.constant 0 : index
    %c144 = arith.constant 144 : index
    %34 = vector.load %arg4[%c0_11, %c144] : memref<8x512xf32, #tpu.memory_space<vmem>>, vector<8x256xf32>
    %c0_12 = arith.constant 0 : index
    %c111 = arith.constant 111 : index
    %35 = vector.load %arg4[%c0_12, %c111] : memref<8x512xf32, #tpu.memory_space<vmem>>, vector<8x256xf32>
    %c0_13 = arith.constant 0 : index
    %c127 = arith.constant 127 : index
    %36 = vector.load %arg4[%c0_13, %c127] : memref<8x512xf32, #tpu.memory_space<vmem>>, vector<8x256xf32>
    %c0_14 = arith.constant 0 : index
    %c143 = arith.constant 143 : index
    %37 = vector.load %arg4[%c0_14, %c143] : memref<8x512xf32, #tpu.memory_space<vmem>>, vector<8x256xf32>
    %c0_15 = arith.constant 0 : index
    %c113 = arith.constant 113 : index
    %38 = vector.load %arg4[%c0_15, %c113] : memref<8x512xf32, #tpu.memory_space<vmem>>, vector<8x256xf32>
    %c0_16 = arith.constant 0 : index
    %c129 = arith.constant 129 : index
    %39 = vector.load %arg4[%c0_16, %c129] : memref<8x512xf32, #tpu.memory_space<vmem>>, vector<8x256xf32>
    %c0_17 = arith.constant 0 : index
    %c145 = arith.constant 145 : index
    %40 = vector.load %arg4[%c0_17, %c145] : memref<8x512xf32, #tpu.memory_space<vmem>>, vector<8x256xf32>
    %41 = vector.shape_cast %24 : vector<1x256xi1> to vector<1x256xi1>
    %42 = vector.broadcast %41 : vector<1x256xi1> to vector<8x256xi1>
    %43 = arith.select %42, %35, %36 : vector<8x256xi1>, vector<8x256xf32>
    %44 = vector.broadcast %28 : vector<1x256xf32> to vector<8x256xf32>
    %45 = arith.mulf %43, %44 : vector<8x256xf32>
    %46 = vector.shape_cast %24 : vector<1x256xi1> to vector<1x256xi1>
    %47 = vector.broadcast %46 : vector<1x256xi1> to vector<8x256xi1>
    %48 = arith.select %47, %36, %37 : vector<8x256xi1>, vector<8x256xf32>
    %49 = vector.broadcast %28 : vector<1x256xf32> to vector<8x256xf32>
    %50 = arith.mulf %48, %49 : vector<8x256xf32>
    %51 = vector.shape_cast %24 : vector<1x256xi1> to vector<1x256xi1>
    %52 = vector.broadcast %51 : vector<1x256xi1> to vector<8x256xi1>
    %53 = arith.select %52, %38, %39 : vector<8x256xi1>, vector<8x256xf32>
    %54 = vector.broadcast %32 : vector<1x256xf32> to vector<8x256xf32>
    %55 = arith.mulf %53, %54 : vector<8x256xf32>
    %56 = vector.shape_cast %24 : vector<1x256xi1> to vector<1x256xi1>
    %57 = vector.broadcast %56 : vector<1x256xi1> to vector<8x256xi1>
    %58 = arith.select %57, %39, %40 : vector<8x256xi1>, vector<8x256xf32>
    %59 = vector.broadcast %32 : vector<1x256xf32> to vector<8x256xf32>
    %60 = arith.mulf %58, %59 : vector<8x256xf32>
    %61 = tpu.concatenate %33, %0, %34, %45, %50, %55, %60 in 0 : vector<8x256xf32>, vector<8x256xf32>, vector<8x256xf32>, vector<8x256xf32>, vector<8x256xf32>, vector<8x256xf32>, vector<8x256xf32> -> vector<56x256xf32>
    %c0_18 = arith.constant 0 : index
    %c0_19 = arith.constant 0 : index
    %62 = vector.load %arg1[%c0_18, %c0_19] : memref<8x56xf32, #tpu.memory_space<vmem>>, vector<8x56xf32>
    %cst_20 = arith.constant dense<0.000000e+00> : vector<8x256xf32>
    %63 = tpu.matmul %62, %61, %cst_20 {dimension_numbers = #tpu.dot_dimension_numbers<[1], [0], [0], [1], [0, 0, 1, 1], [], []>} : vector<8x56xf32>, vector<56x256xf32>, vector<8x256xf32> -> vector<8x256xf32>
    %c0_21 = arith.constant 0 : index
    %c0_22 = arith.constant 0 : index
    %64 = vector.load %arg2[%c0_21, %c0_22] : memref<8x3xf32, #tpu.memory_space<vmem>>, vector<8x1xf32>
    %65 = vector.broadcast %64 : vector<8x1xf32> to vector<8x256xf32>
    %66 = arith.addf %63, %65 : vector<8x256xf32>
    %cst_23 = arith.constant dense<0.000000e+00> : vector<8xf32>
    %67 = vector.multi_reduction <add>, %66, %cst_23 [1] : vector<8x256xf32> to vector<8xf32>
    %68 = vector.shape_cast %67 : vector<8xf32> to vector<8x1xf32>
    %69 = vector.extract_strided_slice %68 {offsets = [0, 0], sizes = [4, 1], strides = [1, 1]} : vector<8x1xf32> to vector<4x1xf32>
    %70 = vector.extract_strided_slice %68 {offsets = [4, 0], sizes = [4, 1], strides = [1, 1]} : vector<8x1xf32> to vector<4x1xf32>
    %71 = arith.addf %69, %70 : vector<4x1xf32>
    %72 = tpu.concatenate %71, %71 in 0 : vector<4x1xf32>, vector<4x1xf32> -> vector<8x1xf32>
    %cst_24 = arith.constant 0.001953125 : f32
    %73 = vector.broadcast %cst_24 : f32 to vector<8x1xf32>
    %74 = arith.mulf %72, %73 : vector<8x1xf32>
    %75 = vector.broadcast %74 : vector<8x1xf32> to vector<8x256xf32>
    %76 = arith.subf %66, %75 : vector<8x256xf32>
    %77 = arith.mulf %76, %76 : vector<8x256xf32>
    %cst_25 = arith.constant dense<0.000000e+00> : vector<8xf32>
    %78 = vector.multi_reduction <add>, %77, %cst_25 [1] : vector<8x256xf32> to vector<8xf32>
    %79 = vector.shape_cast %78 : vector<8xf32> to vector<8x1xf32>
    %80 = vector.extract_strided_slice %79 {offsets = [0, 0], sizes = [4, 1], strides = [1, 1]} : vector<8x1xf32> to vector<4x1xf32>
    %81 = vector.extract_strided_slice %79 {offsets = [4, 0], sizes = [4, 1], strides = [1, 1]} : vector<8x1xf32> to vector<4x1xf32>
    %82 = arith.addf %80, %81 : vector<4x1xf32>
    %83 = tpu.concatenate %82, %82 in 0 : vector<4x1xf32>, vector<4x1xf32> -> vector<8x1xf32>
    %cst_26 = arith.constant 0.001953125 : f32
    %84 = vector.broadcast %cst_26 : f32 to vector<8x1xf32>
    %85 = arith.mulf %83, %84 : vector<8x1xf32>
    %c0_27 = arith.constant 0 : index
    %c1 = arith.constant 1 : index
    %86 = vector.load %arg2[%c0_27, %c1] : memref<8x3xf32, #tpu.memory_space<vmem>>, vector<8x1xf32>
    %cst_28 = arith.constant 9.99999974E-6 : f32
    %87 = vector.broadcast %cst_28 : f32 to vector<8x1xf32>
    %88 = arith.addf %85, %87 : vector<8x1xf32>
    %89 = math.rsqrt %88 : vector<8x1xf32>
    %90 = arith.mulf %86, %89 : vector<8x1xf32>
    %c0_29 = arith.constant 0 : index
    %c2 = arith.constant 2 : index
    %91 = vector.load %arg2[%c0_29, %c2] : memref<8x3xf32, #tpu.memory_space<vmem>>, vector<8x1xf32>
    %92 = arith.mulf %74, %90 : vector<8x1xf32>
    %93 = arith.subf %91, %92 : vector<8x1xf32>
    %94 = vector.broadcast %90 : vector<8x1xf32> to vector<8x256xf32>
    %95 = arith.mulf %66, %94 : vector<8x256xf32>
    %96 = vector.broadcast %93 : vector<8x1xf32> to vector<8x256xf32>
    %97 = arith.addf %95, %96 : vector<8x256xf32>
    %98 = arith.addf %97, %0 : vector<8x256xf32>
    %cst_30 = arith.constant 0.000000e+00 : f32
    %99 = vector.broadcast %cst_30 : f32 to vector<8x256xf32>
    %100 = arith.maximumf %98, %99 : vector<8x256xf32>
    %c0_31 = arith.constant 0 : index
    %c0_32 = arith.constant 0 : index
    %101 = vector.load %arg3[%c0_31, %c0_32] : memref<8x256xf32, #tpu.memory_space<vmem>>, vector<8x256xf32>
    tpu.vector_store %arg3[%c0_31, %c0_32], %100 {strides = array<i32>} : memref<8x256xf32, #tpu.memory_space<vmem>>, vector<8x256xf32>,
    return
  }
}

</mosaic_0001>

<llo_original>
// kernel: hexblock_forward.1
$region0: #{hexblock_forward.1}
  #allocation0 [shape = 'u32[]', space=smem, size = 0x4, offset = 0x4, fixed_abs, tag = 'smem constant byte address 0x4 - core index']
  #allocation1 [shape = 'u32[144,128]{1,0:T(1,128)}', space=vmem, size = 0x12000, scoped, tag = 'internal scratch']
  #allocation2 [shape = 'f32[8,512]{1,0:T(8,128)}', space=vmem, size = 0x4000, scoped, tag = 'scratch operand']
  %s0 = inlined_call_operand.vmem [shape: f32[8,256], index: 0, kind: input, shape index: {}]
  %s1 = inlined_call_operand.vmem [shape: f32[8,56], index: 1, kind: input, shape index: {}]
  %s2 = inlined_call_operand.vmem [shape: f32[8,3], index: 2, kind: input, shape index: {}]
  %s3 = inlined_call_operand.vmem [shape: f32[8,256], index: 3, kind: output, shape index: {}]
  %s4 = sld [smem:[#allocation0]]
  $region22: #{hexblock_forward.1} parent=0
    _
  %s6 = ssub.s32 1, %s4
  %s7 = scalar_select 0, %s6, %s4
  // Predicated region
  $region2: #{hexblock_forward.1} parent=0 // pred_check
    _
  $region3: #{hexblock_forward.1} parent=0 // pred_check_branch
    %9 = sbr.rel (0) target = $region5
  $region4: #{hexblock_forward.1} parent=0 // pred_region
    _
  $region5: #{hexblock_forward.1} parent=0 // pred_fallthru
    _
  // Predicated region
  $region6: #{hexblock_forward.1} parent=0 // pred_check
    _
  $region7: #{hexblock_forward.1} parent=0 // pred_check_branch
    %11 = sbr.rel (0) target = $region9
  $region8: #{hexblock_forward.1} parent=0 // pred_region
    _
  $region9: #{hexblock_forward.1} parent=0 // pred_fallthru
    _
  // Predicated region
  $region10: #{hexblock_forward.1} parent=0 // pred_check
    _
  $region11: #{hexblock_forward.1} parent=0 // pred_check_branch
    %13 = sbr.rel (0) target = $region13
  $region12: #{hexblock_forward.1} parent=0 // pred_region
    _
  $region13: #{hexblock_forward.1} parent=0 // pred_fallthru
    _
  %v14 = vld [vmem:[%s0] sm:$0xff]
  %v15 = vld [vmem:[%s0 + $0x8] sm:$0xff]
  %16 = vst [vmem:[#allocation2] sm:$0xff] 0.0
  %17 = vst [vmem:[#allocation2 + $0x8] sm:$0xff] 0.0
  %18 = vst [vmem:[#allocation2 + $0x10] sm:$0xff] 0.0
  %19 = vst [vmem:[#allocation2 + $0x18] sm:$0xff] 0.0
  %20 = vst [vmem:[#allocation2 + $0x8] sm:$0xff] %v14
  %21 = vst [vmem:[#allocation2 + $0x10] sm:$0xff] %v15
  %v22 = vlaneseq
  %v23 = vand.u32 %v22, 127
  %v24 = vadd.s32 %v23, 128
  %vm25 = vcmp.lt.s32.totalorder %v23, 0
  %v26 = vsub.s32 0, %v23
  %v27 = vsel %vm25, %v26, %v23
  %v28 = vshrl.u32 %v27, 4
  %v29 = vand.u32 %v27, 15
  %v30 = vsub.s32 0, %v29
  %v31 = vsel %vm25, %v30, %v29
  %vm32 = vcmp.lt.s32.totalorder %v24, 0
  %v33 = vsub.s32 0, %v24
  %v34 = vsel %vm32, %v33, %v24
  %v35 = vshrl.u32 %v34, 4
  %v36 = vand.u32 %v34, 15
  %v37 = vsub.s32 0, %v36
  %v38 = vsel %vm32, %v37, %v36
  %vm39 = vcmp.ne.s32.totalorder %v31, 0
  %vm40 = vcmp.ne.s32.totalorder %v38, 0
  %vm41 = vcmp.lt.s32.totalorder %v31, 0
  %vm42 = vcmp.lt.s32.totalorder %v38, 0
  %vm43 = vmand %vm41, %vm39
  %vm44 = vmand %vm42, %vm40
  %v45 = vadd.s32 %v31, 16
  %v46 = vadd.s32 %v38, 16
  %v47 = vsel %vm43, %v45, %v31
  %v48 = vsel %vm44, %v46, %v38
  %v49 = vand.u32 %v47, 1
  %v50 = vand.u32 %v48, 1
  %vm51 = vcmp.eq.s32.totalorder %v49, 0
  %vm52 = vcmp.eq.s32.totalorder %v50, 0
  %vm53 = vcmp.ge.s32.totalorder %v47, 1
  %vm54 = vcmp.ge.s32.totalorder %v48, 1
  %v55 = vsel %vm53, 1, 0
  %v56 = vsel %vm54, 1, 0
  %v57 = vcvt.s32.f32 %v55
  %v58 = vcvt.s32.f32 %v56
  %vm59 = vcmp.le.s32.totalorder %v47, 14
  %vm60 = vcmp.le.s32.totalorder %v48, 14
  %v61 = vsel %vm59, 1, 0
  %v62 = vsel %vm60, 1, 0
  %v63 = vcvt.s32.f32 %v61
  %v64 = vcvt.s32.f32 %v62
  %v65 = vld [vmem:[#allocation2] sm:$0xff]
  %v66 = vld [vmem:[#allocation2 + $0x8] sm:$0xff]
  %v67 = vld [vmem:[#allocation2 + $0x10] sm:$0xff]
  %v68 = vld [vmem:[#allocation2 + $0x8] sm:$0xff]
  %v69 = vld [vmem:[#allocation2 + $0x10] sm:$0xff]
  %v70 = vld [vmem:[#allocation2 + $0x18] sm:$0xff]
  %v71 = vsel %vm51, 1, 0
  %v72 = vsel %vm52, 1, 0
  %vm73 = vcmp.eq.s32.totalorder %v71, 1
  %vm74 = vcmp.eq.s32.totalorder %v72, 1
  %78 = vrot.lane.b32.xlu0 %v65, 17
  %v79 = vpop.permute.xlu0 %78
  %80 = vrot.lane.b32.xlu0 %v66, 17
  %v81 = vpop.permute.xlu0 %80
  %82 = vrot.lane.b32.xlu0 %v67, 17
  %v83 = vpop.permute.xlu0 %82
  %vm84 = vcmask 138240
  %v85 = vsel %vm84, %v79, %v81
  %v86 = vsel %vm84, %v81, %v83
  %89 = vrot.lane.b32.xlu0 %v65, 1
  %v90 = vpop.permute.xlu0 %89
  %91 = vrot.lane.b32.xlu0 %v66, 1
  %v92 = vpop.permute.xlu0 %91
  %93 = vrot.lane.b32.xlu0 %v67, 1
  %v94 = vpop.permute.xlu0 %93
  %vm95 = vcmask 7168
  %v96 = vsel %vm95, %v90, %v92
  %v97 = vsel %vm95, %v92, %v94
  %v100 = vsel %vm73, %v85, %v96
  %v101 = vsel %vm74, %v86, %v97
  %v102 = vmul.f32 %v100, %v57
  %v103 = vmul.f32 %v101, %v58
  %107 = vrot.lane.b32.xlu0 %v68, 113
  %v108 = vpop.permute.xlu0 %107
  %109 = vrot.lane.b32.xlu0 %v69, 113
  %v110 = vpop.permute.xlu0 %109
  %111 = vrot.lane.b32.xlu0 %v70, 113
  %v112 = vpop.permute.xlu0 %111
  %vm113 = vcmask 924672
  %v114 = vsel %vm113, %v108, %v110
  %v115 = vsel %vm113, %v110, %v112
  %v118 = vsel %vm73, %v96, %v114
  %v119 = vsel %vm74, %v97, %v115
  %v120 = vmul.f32 %v118, %v57
  %v121 = vmul.f32 %v119, %v58
  %122 = vrot.lane.b32.xlu0 %v65, 15
  %v123 = vpop.permute.xlu0 %122
  %124 = vrot.lane.b32.xlu0 %v66, 15
  %v125 = vpop.permute.xlu0 %124
  %126 = vrot.lane.b32.xlu0 %v67, 15
  %v127 = vpop.permute.xlu0 %126
  %vm128 = vcmask 121856
  %v129 = vsel %vm128, %v123, %v125
  %v130 = vsel %vm128, %v125, %v127
  %133 = vrot.lane.b32.xlu0 %v68, 127
  %v134 = vpop.permute.xlu0 %133
  %135 = vrot.lane.b32.xlu0 %v69, 127
  %v136 = vpop.permute.xlu0 %135
  %137 = vrot.lane.b32.xlu0 %v70, 127
  %v138 = vpop.permute.xlu0 %137
  %vm139 = vcmask 1039360
  %v140 = vsel %vm139, %v134, %v136
  %v141 = vsel %vm139, %v136, %v138
  %v144 = vsel %vm73, %v129, %v140
  %v145 = vsel %vm74, %v130, %v141
  %v146 = vmul.f32 %v144, %v63
  %v147 = vmul.f32 %v145, %v64
  %148 = vrot.lane.b32.xlu0 %v68, 111
  %v149 = vpop.permute.xlu0 %148
  %150 = vrot.lane.b32.xlu0 %v69, 111
  %v151 = vpop.permute.xlu0 %150
  %152 = vrot.lane.b32.xlu0 %v70, 111
  %v153 = vpop.permute.xlu0 %152
  %vm154 = vcmask 908288
  %v155 = vsel %vm154, %v149, %v151
  %v156 = vsel %vm154, %v151, %v153
  %v159 = vsel %vm73, %v140, %v155
  %v160 = vsel %vm74, %v141, %v156
  %v161 = vmul.f32 %v159, %v63
  %v162 = vmul.f32 %v160, %v64
  %165 = vrot.lane.b32.xlu0 %v14, 112
  %v166 = vpop.permute.xlu0 %165
  %167 = vrot.lane.b32.xlu0 %v15, 112
  %v168 = vpop.permute.xlu0 %167
  %vm169 = vcmask 916480
  %v170 = vsel %vm169, %v166, %v168
  %171 = vrot.lane.b32.xlu0 %v68, 96
  %v172 = vpop.permute.xlu0 %171
  %173 = vrot.lane.b32.xlu0 %v69, 96
  %v174 = vpop.permute.xlu0 %173
  %175 = vrot.lane.b32.xlu0 %v70, 96
  %v176 = vpop.permute.xlu0 %175
  %vm177 = vcmask 785408
  %v178 = vsel %vm177, %v172, %v174
  %v179 = vsel %vm177, %v174, %v176
  %182 = vrot.lane.b32.xlu0 %v102, 112
  %v183 = vpop.permute.xlu0 %182
  %184 = vrot.lane.b32.xlu0 %v103, 112
  %v185 = vpop.permute.xlu0 %184
  %v186 = vsel %vm169, %v183, %v185
  %189 = vrot.lane.b32.xlu0 %v120, 112
  %v190 = vpop.permute.xlu0 %189
  %191 = vrot.lane.b32.xlu0 %v121, 112
  %v192 = vpop.permute.xlu0 %191
  %v193 = vsel %vm169, %v190, %v192
  %196 = vrot.lane.b32.xlu0 %v146, 112
  %v197 = vpop.permute.xlu0 %196
  %198 = vrot.lane.b32.xlu0 %v147, 112
  %v199 = vpop.permute.xlu0 %198
  %v200 = vsel %vm169, %v197, %v199
  %203 = vrot.lane.b32.xlu0 %v161, 112
  %v204 = vpop.permute.xlu0 %203
  %205 = vrot.lane.b32.xlu0 %v162, 112
  %v206 = vpop.permute.xlu0 %205
  %v207 = vsel %vm169, %v204, %v206
  %v208 = vld [vmem:[%s1] sm:$0xff]
  %v209 = vld [vmem:[%s2] sm:$0xff]
  %211 = vset.pattern.permute.xlu0 0
  %212 = vperm.xlu0 %211, %v209
  %v213 = vpop.permute.xlu0 %212
  %215 = vrot.lane.b32.xlu0 %v65, 16
  %v216 = vpop.permute.xlu0 %215
  %217 = vrot.lane.b32.xlu0 %v66, 16
  %v218 = vpop.permute.xlu0 %217
  %219 = vrot.lane.b32.xlu0 %v67, 16
  %v220 = vpop.permute.xlu0 %219
  %221 = vrot.lane.b32.xlu0 %v166, 16
  %v222 = vpop.permute.xlu0 %221
  %223 = vrot.lane.b32.xlu0 %v170, 16
  %v224 = vpop.permute.xlu0 %223
  %225 = vrot.lane.b32.xlu0 %v168, 16
  %v226 = vpop.permute.xlu0 %225
  %227 = vrot.lane.b32.xlu0 %v172, 16
  %v228 = vpop.permute.xlu0 %227
  %229 = vrot.lane.b32.xlu0 %v178, 16
  %v230 = vpop.permute.xlu0 %229
  %231 = vrot.lane.b32.xlu0 %v179, 16
  %v232 = vpop.permute.xlu0 %231
  %233 = vrot.lane.b32.xlu0 %v183, 16
  %v234 = vpop.permute.xlu0 %233
  %235 = vrot.lane.b32.xlu0 %v186, 16
  %v236 = vpop.permute.xlu0 %235
  %237 = vrot.lane.b32.xlu0 %v185, 16
  %v238 = vpop.permute.xlu0 %237
  %239 = vrot.lane.b32.xlu0 %v190, 16
  %v240 = vpop.permute.xlu0 %239
  %241 = vrot.lane.b32.xlu0 %v193, 16
  %v242 = vpop.permute.xlu0 %241
  %243 = vrot.lane.b32.xlu0 %v192, 16
  %v244 = vpop.permute.xlu0 %243
  %245 = vrot.lane.b32.xlu0 %v197, 16
  %v246 = vpop.permute.xlu0 %245
  %247 = vrot.lane.b32.xlu0 %v200, 16
  %v248 = vpop.permute.xlu0 %247
  %249 = vrot.lane.b32.xlu0 %v199, 16
  %v250 = vpop.permute.xlu0 %249
  %251 = vrot.lane.b32.xlu0 %v204, 16
  %v252 = vpop.permute.xlu0 %251
  %253 = vrot.lane.b32.xlu0 %v207, 16
  %v254 = vpop.permute.xlu0 %253
  %255 = vrot.lane.b32.xlu0 %v206, 16
  %v256 = vpop.permute.xlu0 %255
  %vm257 = vcmask 130048
  %v258 = vsel %vm257, %v216, %v218
  %v259 = vsel %vm257, %v218, %v220
  %v260 = vsel %vm257, %v222, %v224
  %v261 = vsel %vm257, %v224, %v226
  %v262 = vsel %vm257, %v228, %v230
  %v263 = vsel %vm257, %v230, %v232
  %v264 = vsel %vm257, %v234, %v236
  %v265 = vsel %vm257, %v236, %v238
  %v266 = vsel %vm257, %v240, %v242
  %v267 = vsel %vm257, %v242, %v244
  %v268 = vsel %vm257, %v246, %v248
  %v269 = vsel %vm257, %v248, %v250
  %v270 = vsel %vm257, %v252, %v254
  %v271 = vsel %vm257, %v254, %v256
  %vm286 = vcmask 457728
  %v288 = vsel %vm286, %v208, 0
  %290 = vmatprep.subr.mxu0 %v259
  %291 = vmatpush1.msra.mxu0 %v258
  %292 = vmatprep.subr.mxu0 %v261
  %293 = vmatpush1.msra.mxu0 %v260
  %294 = vmatprep.subr.mxu0 %v263
  %295 = vmatpush1.msra.mxu0 %v262
  %296 = vmatprep.subr.mxu0 %v265
  %297 = vmatpush1.msra.mxu0 %v264
  %298 = vmatprep.subr.mxu0 %v267
  %299 = vmatpush1.msra.mxu0 %v266
  %300 = vmatprep.subr.mxu0 %v269
  %301 = vmatpush1.msra.mxu0 %v268
  %302 = vmatprep.subr.mxu0 %v271
  %303 = vmatpush1.msra.mxu0 %v270
  %304 = vmatprep.subr.mxu0 0.0
  %305 = vmatpush1.msra.mxu0 0.0
  %306 = vmatprep.subr.mxu0 0.0
  %307 = vmatpush1.msra.mxu0 0.0
  %308 = vmatprep.subr.mxu0 0.0
  %309 = vmatpush1.msra.mxu0 0.0
  %310 = vmatprep.subr.mxu0 0.0
  %311 = vmatpush1.msra.mxu0 0.0
  %312 = vmatprep.subr.mxu0 0.0
  %313 = vmatpush1.msra.mxu0 0.0
  %314 = vmatprep.subr.mxu0 0.0
  %315 = vmatpush1.msra.mxu0 0.0
  %316 = vmatprep.subr.mxu0 0.0
  %317 = vmatpush1.msra.mxu0 0.0
  %318 = vmatprep.subr.mxu0 0.0
  %319 = vmatpush1.msra.mxu0 0.0
  %320 = vmatprep.subr.mxu0 0.0
  %321 = vmatpush1.msra.mxu0 0.0
  %322 = vmatprep.subr.mxu0 0.0
  %323 = vmatpush1.msra.mxu0 0.0
  %324 = vmatprep.subr.mxu0 0.0
  %325 = vmatpush1.msra.mxu0 0.0
  %326 = vmatprep.subr.mxu0 0.0
  %327 = vmatpush1.msra.mxu0 0.0
  %328 = vmatprep.subr.mxu0 0.0
  %329 = vmatpush1.msra.mxu0 0.0
  %330 = vmatprep.subr.mxu0 0.0
  %331 = vmatpush1.msra.mxu0 0.0
  %332 = vmatprep.subr.mxu0 0.0
  %333 = vmatpush1.msra.mxu0 0.0
  %334 = vmatprep.subr.mxu0 0.0
  %335 = vmatpush1.msra.mxu0 0.0
  %336 = vmatprep.subr.mxu0 0.0
  %337 = vmatpush1.msra.mxu0 0.0
  %338 = vmatprep.subr.mxu0 0.0
  %339 = vmatpush1.msra.mxu0 0.0
  %340 = vmatprep.subr.mxu0 0.0
  %341 = vmatpush1.msra.mxu0 0.0
  %342 = vmatprep.subr.mxu0 0.0
  %343 = vmatpush1.msra.mxu0 0.0
  %344 = vmatprep.subr.mxu0 0.0
  %345 = vmatpush1.msra.mxu0 0.0
  %346 = vmatprep.subr.mxu0 0.0
  %347 = vmatpush1.msra.mxu0 0.0
  %348 = vmatprep.subr.mxu0 0.0
  %349 = vmatpush1.msra.mxu0 0.0
  %350 = vmatprep.subr.mxu0 0.0
  %351 = vmatpush1.msra.mxu0 0.0
  %352 = vmatprep.subr.mxu0 0.0
  %353 = vmatpush1.msra.mxu0 0.0
  %354 = vmatprep.mubr.f32.mxu0 0.0
  %355 = vmatmul.mubr.f32.gmra.mrb[0].mxu0 %v288
  %v356 = vpop.f32.mrb[0].mxu0
  %v357 = vadd.f32 %v213, %v356
  %v358 = vpop.f32.mrb[0].mxu0
  %v359 = vadd.f32 %v213, %v358
  %360 = vdwg.mxu0
  %v361 = vadd.f32 %v357, %v359
  %362 = vadd.xlane.f32.xlu0 %v361
  %v363 = vpop.xlane.xlu0 %362
  %v365 = vrot.slane %v363, 4
  %v367 = vadd.f32 %v363, %v365
  %v369 = vrot.slane %v367, 4
  %vm371 = vcmask 1043456
  %v372 = vsel %vm371, %v367, %v369
  %v373 = vmul.f32 %v372, 0.001953125
  %375 = vset.pattern.permute.xlu0 0
  %376 = vperm.xlu0 %375, %v373
  %v377 = vpop.permute.xlu0 %376
  %v379 = vsub.f32 %v357, %v377
  %v380 = vsub.f32 %v359, %v377
  %v381 = vmul.f32 %v379, %v379
  %v382 = vmul.f32 %v380, %v380
  %v383 = vadd.f32 %v381, %v382
  %384 = vadd.xlane.f32.xlu0 %v383
  %v385 = vpop.xlane.xlu0 %384
  %v387 = vrot.slane %v385, 4
  %v389 = vadd.f32 %v385, %v387
  %v391 = vrot.slane %v389, 4
  %v393 = vsel %vm371, %v389, %v391
  %v394 = vmul.f32 %v393, 0.001953125
  %v395 = vadd.f32 %v394, 1e-05
  %v396 = vrsqrt.pop %v395
  %398 = vrot.lane.b32.xlu0 %v396, 1
  %v399 = vpop.permute.xlu0 %398
  %v401 = vmul.f32 %v209, %v399
  %403 = vrot.lane.b32.xlu0 %v401, 127
  %v404 = vpop.permute.xlu0 %403
  %v406 = vmul.f32 %v373, %v404
  %408 = vrot.lane.b32.xlu0 %v406, 2
  %v409 = vpop.permute.xlu0 %408
  %v411 = vsub.f32 %v209, %v409
  %412 = vset.pattern.permute.xlu0 1
  %413 = vperm.xlu0 %412, %v401
  %v414 = vpop.permute.xlu0 %413
  %v416 = vmul.f32 %v357, %v414
  %v417 = vmul.f32 %v359, %v414
  %419 = vset.pattern.permute.xlu0 2
  %420 = vperm.xlu0 %419, %v411
  %v421 = vpop.permute.xlu0 %420
  %v423 = vadd.f32 %v416, %v421
  %v424 = vadd.f32 %v417, %v421
  %v425 = vadd.f32 %v423, %v14
  %v426 = vadd.f32 %v424, %v15
  %v427 = vmax.f32 %v425, 0.0
  %v428 = vmax.f32 %v426, 0.0
  %429 = vst [vmem:[%s3] sm:$0xff] %v427
  %430 = vst [vmem:[%s3 + $0x8] sm:$0xff] %v428
  // Predicated region
  $region14: #{hexblock_forward.1} parent=0 // pred_check
    _
  $region15: #{hexblock_forward.1} parent=0 // pred_check_branch
    %432 = sbr.rel (0) target = $region17
  $region16: #{hexblock_forward.1} parent=0 // pred_region
    _
  $region17: #{hexblock_forward.1} parent=0 // pred_fallthru
    _
  // Predicated region
  $region18: #{hexblock_forward.1} parent=0 // pred_check
    _
  $region19: #{hexblock_forward.1} parent=0 // pred_check_branch
    %434 = sbr.rel (0) target = $region21
  $region20: #{hexblock_forward.1} parent=0 // pred_region
    _
  $region21: #{hexblock_forward.1} parent=0 // pred_fallthru
    _

</llo_original>
